<compile_context>
chip_gen: v5e
topology: v5e:2x2
jax: 0.10.0
libtpu: 0.0.40
codegen_flags: <defaults>
</compile_context>

<pallas_src>
import jax
import jax.numpy as jnp
from jax.experimental import pallas as pl
from jax.experimental.pallas import tpu as pltpu


def _round_up(x, m):
    return ((x + m - 1) // m) * m


def _make_moe_kernel(num_source, num_classes):
    S, C = num_source, num_classes

    def moe_kernel(fs_ref, fp_ref,                    # (TB, Ds), (TB, Dp)   f32
                   gw1s_ref, gw1p_ref, gb1_ref,       # (Ds,H),(Dp,H) bf16, (1,H) f32
                   gw2_ref, gb2_ref,                  # (H,S) bf16, (1,S) f32
                   ew1s_ref, ew1p_ref, eb1_ref,       # (Ds,S*H),(Dp,S*H) bf16,(1,S*H) f32
                   ew2_ref, eb2_ref,                  # (S*H,S*C) bf16, (1,S*C) f32
                   out_ref,                           # (TB, C)  f32
                   gate_out_ref):                     # (TB, S)  f32
        # activations: bf16 at matmul inputs only, f32 everywhere else
        fs = fs_ref[...].astype(jnp.bfloat16)
        fp = fp_ref[...].astype(jnp.bfloat16)

        # ---- gate MLP: Linear -> ReLU -> Linear -> softmax -------------------
        gh = (jnp.dot(fs, gw1s_ref[...], preferred_element_type=jnp.float32)
              + jnp.dot(fp, gw1p_ref[...], preferred_element_type=jnp.float32)
              + gb1_ref[...])
        gh = jnp.maximum(gh, 0.0)
        glogits = (jnp.dot(gh.astype(jnp.bfloat16), gw2_ref[...],
                           preferred_element_type=jnp.float32) + gb2_ref[...])
        gmax = jnp.max(glogits, axis=-1, keepdims=True)
        gexp = jnp.exp(glogits - gmax)
        gsum = jnp.sum(gexp, axis=-1, keepdims=True)
        gate = gexp * pl.reciprocal(gsum, approx=True)            # (TB, S), EUP recip
        gate_out_ref[...] = gate

        # ---- experts: fused layer-1 + block-diagonal layer-2 -----------------
        eh = (jnp.dot(fs, ew1s_ref[...], preferred_element_type=jnp.float32)
              + jnp.dot(fp, ew1p_ref[...], preferred_element_type=jnp.float32)
              + eb1_ref[...])                                     # (TB, S*H)
        eh = jnp.maximum(eh, 0.0)
        elogits = (jnp.dot(eh.astype(jnp.bfloat16), ew2_ref[...],
                           preferred_element_type=jnp.float32) + eb2_ref[...])  # (TB, S*C)

        # per-expert log_softmax + gate-weighted sum (S is small & static)
        acc = jnp.zeros(out_ref.shape, jnp.float32)
        for s in range(S):
            logit_s = elogits[:, s * C:(s + 1) * C]                # (TB, C)
            m = jnp.max(logit_s, axis=-1, keepdims=True)
            lse = m + jnp.log(jnp.sum(jnp.exp(logit_s - m), axis=-1, keepdims=True))
            acc = acc + gate[:, s:s + 1] * (logit_s - lse)
        out_ref[...] = acc

    return moe_kernel


def classifier_moe_forward(fs, fp, params, *, block_b=512):
    """Forward pass of ClassifierMoE.  Returns (output, gate_outs).

    block_b: batch tile size.  512 rows is safe for all generations at these
    feature widths; re-derive for very wide D on v7x (64 MiB VMEM / 32 MiB
    scoped default, 2 inputs x 2 buffers x TB x D x 4B must fit).
    """
    gw1, gb1, gw2, gb2, ew1, eb1, ew2, eb2 = params
    S, D, H = ew1.shape
    C = ew2.shape[-1]
    Ds, Dp = fs.shape[-1], fp.shape[-1]
    assert Ds + Dp == D == gw1.shape[0]

    wdt = jnp.bfloat16

    # Split layer-1 weights along K so concat(fs, fp) never materializes.
    gw1s = gw1[:Ds].astype(wdt)
    gw1p = gw1[Ds:].astype(wdt)
    gw2b = gw2.astype(wdt)
    gb1f = gb1.astype(jnp.float32)
    gb2f = gb2.astype(jnp.float32)

    # Fuse expert layer-1: (S, D, H) -> (D, S*H), split along K.
    ew1_all = jnp.transpose(ew1, (1, 0, 2)).reshape(D, S * H)
    ew1s = ew1_all[:Ds].astype(wdt)
    ew1p = ew1_all[Ds:].astype(wdt)
    eb1_all = eb1.reshape(1, S * H).astype(jnp.float32)

    # Block-diagonal expert layer-2: (S*H, S*C).
    ew2_blk = jax.scipy.linalg.block_diag(*[ew2[s] for s in range(S)]).astype(wdt)
    eb2_all = eb2.reshape(1, S * C).astype(jnp.float32)

    # NOTE: gate_input = stop_gradient(features) in the torch module; detach is
    # identity in the forward pass so the gate simply reuses the same features.

    B = fs.shape[0]
    tb = min(block_b, _round_up(B, 8))
    Bp = _round_up(B, tb)
    fs32 = fs.astype(jnp.float32)
    fp32 = fp.astype(jnp.float32)
    if Bp != B:
        pad = ((0, Bp - B), (0, 0))
        fs32 = jnp.pad(fs32, pad)
        fp32 = jnp.pad(fp32, pad)

    row = lambda i: (i, 0)      # batch-tiled operands
    full = lambda i: (0, 0)     # weights: VMEM-resident, same block every step

    out, gate_outs = pl.pallas_call(
        _make_moe_kernel(S, C),
        out_shape=(
            jax.ShapeDtypeStruct((Bp, C), jnp.float32),
            jax.ShapeDtypeStruct((Bp, S), jnp.float32),
        ),
        grid=(Bp // tb,),
        in_specs=[
            pl.BlockSpec((tb, Ds), row),
            pl.BlockSpec((tb, Dp), row),
            pl.BlockSpec((Ds, H), full),
            pl.BlockSpec((Dp, H), full),
            pl.BlockSpec((1, H), full),
            pl.BlockSpec((H, S), full),
            pl.BlockSpec((1, S), full),
            pl.BlockSpec((Ds, S * H), full),
            pl.BlockSpec((Dp, S * H), full),
            pl.BlockSpec((1, S * H), full),
            pl.BlockSpec((S * H, S * C), full),
            pl.BlockSpec((1, S * C), full),
        ],
        out_specs=(
            pl.BlockSpec((tb, C), row),
            pl.BlockSpec((tb, S), row),
        ),
        compiler_params=pltpu.CompilerParams(
            dimension_semantics=("parallel",)),
    )(fs32, fp32, gw1s, gw1p, gb1f, gw2b, gb2f, ew1s, ew1p, eb1_all, ew2_blk, eb2_all)

    if Bp != B:
        out = out[:B]
        gate_outs = gate_outs[:B]
    return out, gate_outs


def init_params(key, input_size, output_size, num_source):
    hidden = input_size // 2
    ks = jax.random.split(key, 8)
    scale = 0.1
    gw1 = scale * jax.random.normal(ks[0], (input_size, hidden), jnp.float32)
    gb1 = scale * jax.random.normal(ks[1], (1, hidden), jnp.float32)
    gw2 = scale * jax.random.normal(ks[2], (hidden, num_source), jnp.float32)
    gb2 = scale * jax.random.normal(ks[3], (1, num_source), jnp.float32)
    ew1 = scale * jax.random.normal(ks[4], (num_source, input_size, hidden), jnp.float32)
    eb1 = scale * jax.random.normal(ks[5], (num_source, 1, hidden), jnp.float32)
    ew2 = scale * jax.random.normal(ks[6], (num_source, hidden, output_size), jnp.float32)
    eb2 = scale * jax.random.normal(ks[7], (num_source, 1, output_size), jnp.float32)
    return gw1, gb1, gw2, gb2, ew1, eb1, ew2, eb2


def reference_forward(fs, fp, params, wdt=jnp.bfloat16):
    """Pure-JAX reference mirroring the kernel's bf16-at-matmul-input casts."""
    gw1, gb1, gw2, gb2, ew1, eb1, ew2, eb2 = params
    cast = lambda x: x.astype(wdt).astype(jnp.float32)
    f = cast(jnp.concatenate([fs, fp], axis=-1))
    gh = jax.nn.relu(f @ cast(gw1) + gb1)
    gate = jax.nn.softmax(cast(gh) @ cast(gw2) + gb2, axis=-1)
    expert_outs = []
    for s in range(ew1.shape[0]):
        eh = jax.nn.relu(f @ cast(ew1[s]) + eb1[s])
        expert_outs.append(jax.nn.log_softmax(cast(eh) @ cast(ew2[s]) + eb2[s], axis=-1))
    expert_outs = jnp.stack(expert_outs, axis=-2)                 # (B, S, C)
    out = jnp.sum(gate[..., None] * expert_outs, axis=-2)         # (B, C)
    return out, gate


if __name__ == "__main__":
    B = 8
    D_s, D_p = 16, 16
    input_size = D_s + D_p          # 32
    output_size = 8
    num_source = 4
    # dropout is identity at eval -> not modeled.

    key = jax.random.PRNGKey(0)
    k_fs, k_fp, k_params = jax.random.split(key, 3)
    fs = jax.random.normal(k_fs, (B, D_s), jnp.float32)
    fp = jax.random.normal(k_fp, (B, D_p), jnp.float32)
    params = init_params(k_params, input_size, output_size, num_source)

    out, gate_outs = classifier_moe_forward(fs, fp, params)
    out, gate_outs = jax.block_until_ready((out, gate_outs))

    ref_out, ref_gate = reference_forward(fs, fp, params)
    assert out.shape == (B, output_size)
    assert gate_outs.shape == (B, num_source)
    # Tolerance budget: bf16 matmul operands + EUP approximate reciprocal in the
    # gate softmax (a per-row scale error of ~2^-8..2^-12).
    assert jnp.allclose(gate_outs, ref_gate, atol=2e-2, rtol=2e-2), (
        float(jnp.max(jnp.abs(gate_outs - ref_gate))))
    assert jnp.allclose(out, ref_out, atol=2e-2, rtol=2e-2), (
        float(jnp.max(jnp.abs(out - ref_out))))

    print("KERNEL_OK")
</pallas_src>

<mosaic_0001>
module attributes {stable_mosaic.version = 11 : i64} {
  func.func @moe_kernel(%arg0: i32, %arg1: memref<8x16xf32, #tpu.memory_space<vmem>>, %arg2: memref<8x16xf32, #tpu.memory_space<vmem>>, %arg3: memref<16x16xbf16, #tpu.memory_space<vmem>>, %arg4: memref<16x16xbf16, #tpu.memory_space<vmem>>, %arg5: memref<1x16xf32, #tpu.memory_space<vmem>>, %arg6: memref<16x4xbf16, #tpu.memory_space<vmem>>, %arg7: memref<1x4xf32, #tpu.memory_space<vmem>>, %arg8: memref<16x64xbf16, #tpu.memory_space<vmem>>, %arg9: memref<16x64xbf16, #tpu.memory_space<vmem>>, %arg10: memref<1x64xf32, #tpu.memory_space<vmem>>, %arg11: memref<64x32xbf16, #tpu.memory_space<vmem>>, %arg12: memref<1x32xf32, #tpu.memory_space<vmem>>, %arg13: memref<8x8xf32, #tpu.memory_space<vmem>>, %arg14: memref<8x4xf32, #tpu.memory_space<vmem>>) attributes {dimension_semantics = [#tpu.dimension_semantics<parallel>], iteration_bounds = array<i64: 1>, scalar_prefetch = 0 : i64, scratch_operands = 0 : i64, tpu.core_type = #tpu.core_type<tc>, window_params = [{transform_indices = @transform_0, window_bounds = array<i64: 8, 16>}, {transform_indices = @transform_1, window_bounds = array<i64: 8, 16>}, {pipeline_mode = #tpu.pipeline_mode<synchronous>, transform_indices = @transform_2, window_bounds = array<i64: 16, 16>}, {pipeline_mode = #tpu.pipeline_mode<synchronous>, transform_indices = @transform_3, window_bounds = array<i64: 16, 16>}, {pipeline_mode = #tpu.pipeline_mode<synchronous>, transform_indices = @transform_4, window_bounds = array<i64: 1, 16>}, {pipeline_mode = #tpu.pipeline_mode<synchronous>, transform_indices = @transform_5, window_bounds = array<i64: 16, 4>}, {pipeline_mode = #tpu.pipeline_mode<synchronous>, transform_indices = @transform_6, window_bounds = array<i64: 1, 4>}, {pipeline_mode = #tpu.pipeline_mode<synchronous>, transform_indices = @transform_7, window_bounds = array<i64: 16, 64>}, {pipeline_mode = #tpu.pipeline_mode<synchronous>, transform_indices = @transform_8, window_bounds = array<i64: 16, 64>}, {pipeline_mode = #tpu.pipeline_mode<synchronous>, transform_indices = @transform_9, window_bounds = array<i64: 1, 64>}, {pipeline_mode = #tpu.pipeline_mode<synchronous>, transform_indices = @transform_10, window_bounds = array<i64: 64, 32>}, {pipeline_mode = #tpu.pipeline_mode<synchronous>, transform_indices = @transform_11, window_bounds = array<i64: 1, 32>}, {transform_indices = @transform_12, window_bounds = array<i64: 8, 8>}, {transform_indices = @transform_13, window_bounds = array<i64: 8, 4>}]} {
    %c0 = arith.constant 0 : index
    %c0_0 = arith.constant 0 : index
    %0 = vector.load %arg1[%c0, %c0_0] : memref<8x16xf32, #tpu.memory_space<vmem>>, vector<8x16xf32>
    %1 = arith.truncf %0 : vector<8x16xf32> to vector<8x16xbf16>
    %c0_1 = arith.constant 0 : index
    %c0_2 = arith.constant 0 : index
    %2 = vector.load %arg2[%c0_1, %c0_2] : memref<8x16xf32, #tpu.memory_space<vmem>>, vector<8x16xf32>
    %3 = arith.truncf %2 : vector<8x16xf32> to vector<8x16xbf16>
    %c0_3 = arith.constant 0 : index
    %c0_4 = arith.constant 0 : index
    %4 = vector.load %arg3[%c0_3, %c0_4] : memref<16x16xbf16, #tpu.memory_space<vmem>>, vector<16x16xbf16>
    %cst = arith.constant dense<0.000000e+00> : vector<8x16xf32>
    %5 = tpu.matmul %1, %4, %cst {dimension_numbers = #tpu.dot_dimension_numbers<[1], [0], [0], [1], [0, 0, 1, 1], [], []>} : vector<8x16xbf16>, vector<16x16xbf16>, vector<8x16xf32> -> vector<8x16xf32>
    %c0_5 = arith.constant 0 : index
    %c0_6 = arith.constant 0 : index
    %6 = vector.load %arg4[%c0_5, %c0_6] : memref<16x16xbf16, #tpu.memory_space<vmem>>, vector<16x16xbf16>
    %cst_7 = arith.constant dense<0.000000e+00> : vector<8x16xf32>
    %7 = tpu.matmul %3, %6, %cst_7 {dimension_numbers = #tpu.dot_dimension_numbers<[1], [0], [0], [1], [0, 0, 1, 1], [], []>} : vector<8x16xbf16>, vector<16x16xbf16>, vector<8x16xf32> -> vector<8x16xf32>
    %8 = arith.addf %5, %7 : vector<8x16xf32>
    %c0_8 = arith.constant 0 : index
    %c0_9 = arith.constant 0 : index
    %9 = vector.load %arg5[%c0_8, %c0_9] : memref<1x16xf32, #tpu.memory_space<vmem>>, vector<1x16xf32>
    %10 = vector.broadcast %9 : vector<1x16xf32> to vector<8x16xf32>
    %11 = arith.addf %8, %10 : vector<8x16xf32>
    %cst_10 = arith.constant 0.000000e+00 : f32
    %12 = vector.broadcast %cst_10 : f32 to vector<8x16xf32>
    %13 = arith.maximumf %11, %12 : vector<8x16xf32>
    %14 = arith.truncf %13 : vector<8x16xf32> to vector<8x16xbf16>
    %c0_11 = arith.constant 0 : index
    %c0_12 = arith.constant 0 : index
    %15 = vector.load %arg6[%c0_11, %c0_12] : memref<16x4xbf16, #tpu.memory_space<vmem>>, vector<16x4xbf16>
    %cst_13 = arith.constant dense<0.000000e+00> : vector<8x4xf32>
    %16 = tpu.matmul %14, %15, %cst_13 {dimension_numbers = #tpu.dot_dimension_numbers<[1], [0], [0], [1], [0, 0, 1, 1], [], []>} : vector<8x16xbf16>, vector<16x4xbf16>, vector<8x4xf32> -> vector<8x4xf32>
    %c0_14 = arith.constant 0 : index
    %c0_15 = arith.constant 0 : index
    %17 = vector.load %arg7[%c0_14, %c0_15] : memref<1x4xf32, #tpu.memory_space<vmem>>, vector<1x4xf32>
    %18 = vector.broadcast %17 : vector<1x4xf32> to vector<8x4xf32>
    %19 = arith.addf %16, %18 : vector<8x4xf32>
    %cst_16 = arith.constant dense<0xFF800000> : vector<8xf32>
    %20 = vector.multi_reduction <maximumf>, %19, %cst_16 [1] : vector<8x4xf32> to vector<8xf32>
    %21 = vector.shape_cast %20 : vector<8xf32> to vector<8x1xf32>
    %22 = vector.broadcast %21 : vector<8x1xf32> to vector<8x4xf32>
    %23 = arith.subf %19, %22 : vector<8x4xf32>
    %24 = math.exp %23 : vector<8x4xf32>
    %cst_17 = arith.constant dense<0.000000e+00> : vector<8xf32>
    %25 = vector.multi_reduction <add>, %24, %cst_17 [1] : vector<8x4xf32> to vector<8xf32>
    %26 = vector.shape_cast %25 : vector<8xf32> to vector<8x1xf32>
    %27 = tpu.reciprocal %26 {approx = true} : vector<8x1xf32> -> vector<8x1xf32>
    %28 = vector.broadcast %27 : vector<8x1xf32> to vector<8x4xf32>
    %29 = arith.mulf %24, %28 : vector<8x4xf32>
    %c0_18 = arith.constant 0 : index
    %c0_19 = arith.constant 0 : index
    %30 = vector.load %arg14[%c0_18, %c0_19] : memref<8x4xf32, #tpu.memory_space<vmem>>, vector<8x4xf32>
    tpu.vector_store %arg14[%c0_18, %c0_19], %29 {strides = array<i32>} : memref<8x4xf32, #tpu.memory_space<vmem>>, vector<8x4xf32>,
    %c0_20 = arith.constant 0 : index
    %c0_21 = arith.constant 0 : index
    %31 = vector.load %arg8[%c0_20, %c0_21] : memref<16x64xbf16, #tpu.memory_space<vmem>>, vector<16x64xbf16>
    %cst_22 = arith.constant dense<0.000000e+00> : vector<8x64xf32>
    %32 = tpu.matmul %1, %31, %cst_22 {dimension_numbers = #tpu.dot_dimension_numbers<[1], [0], [0], [1], [0, 0, 1, 1], [], []>} : vector<8x16xbf16>, vector<16x64xbf16>, vector<8x64xf32> -> vector<8x64xf32>
    %c0_23 = arith.constant 0 : index
    %c0_24 = arith.constant 0 : index
    %33 = vector.load %arg9[%c0_23, %c0_24] : memref<16x64xbf16, #tpu.memory_space<vmem>>, vector<16x64xbf16>
    %cst_25 = arith.constant dense<0.000000e+00> : vector<8x64xf32>
    %34 = tpu.matmul %3, %33, %cst_25 {dimension_numbers = #tpu.dot_dimension_numbers<[1], [0], [0], [1], [0, 0, 1, 1], [], []>} : vector<8x16xbf16>, vector<16x64xbf16>, vector<8x64xf32> -> vector<8x64xf32>
    %35 = arith.addf %32, %34 : vector<8x64xf32>
    %c0_26 = arith.constant 0 : index
    %c0_27 = arith.constant 0 : index
    %36 = vector.load %arg10[%c0_26, %c0_27] : memref<1x64xf32, #tpu.memory_space<vmem>>, vector<1x64xf32>
    %37 = vector.broadcast %36 : vector<1x64xf32> to vector<8x64xf32>
    %38 = arith.addf %35, %37 : vector<8x64xf32>
    %cst_28 = arith.constant 0.000000e+00 : f32
    %39 = vector.broadcast %cst_28 : f32 to vector<8x64xf32>
    %40 = arith.maximumf %38, %39 : vector<8x64xf32>
    %41 = arith.truncf %40 : vector<8x64xf32> to vector<8x64xbf16>
    %c0_29 = arith.constant 0 : index
    %c0_30 = arith.constant 0 : index
    %42 = vector.load %arg11[%c0_29, %c0_30] : memref<64x32xbf16, #tpu.memory_space<vmem>>, vector<64x32xbf16>
    %cst_31 = arith.constant dense<0.000000e+00> : vector<8x32xf32>
    %43 = tpu.matmul %41, %42, %cst_31 {dimension_numbers = #tpu.dot_dimension_numbers<[1], [0], [0], [1], [0, 0, 1, 1], [], []>} : vector<8x64xbf16>, vector<64x32xbf16>, vector<8x32xf32> -> vector<8x32xf32>
    %c0_32 = arith.constant 0 : index
    %c0_33 = arith.constant 0 : index
    %44 = vector.load %arg12[%c0_32, %c0_33] : memref<1x32xf32, #tpu.memory_space<vmem>>, vector<1x32xf32>
    %45 = vector.broadcast %44 : vector<1x32xf32> to vector<8x32xf32>
    %46 = arith.addf %43, %45 : vector<8x32xf32>
    %cst_34 = arith.constant 0.000000e+00 : f32
    %47 = vector.broadcast %cst_34 : f32 to vector<8x8xf32>
    %48 = vector.extract_strided_slice %46 {offsets = [0, 0], sizes = [8, 8], strides = [1, 1]} : vector<8x32xf32> to vector<8x8xf32>
    %cst_35 = arith.constant dense<0xFF800000> : vector<8xf32>
    %49 = vector.multi_reduction <maximumf>, %48, %cst_35 [1] : vector<8x8xf32> to vector<8xf32>
    %50 = vector.shape_cast %49 : vector<8xf32> to vector<8x1xf32>
    %51 = vector.broadcast %50 : vector<8x1xf32> to vector<8x8xf32>
    %52 = arith.subf %48, %51 : vector<8x8xf32>
    %53 = math.exp %52 : vector<8x8xf32>
    %cst_36 = arith.constant dense<0.000000e+00> : vector<8xf32>
    %54 = vector.multi_reduction <add>, %53, %cst_36 [1] : vector<8x8xf32> to vector<8xf32>
    %55 = vector.shape_cast %54 : vector<8xf32> to vector<8x1xf32>
    %56 = math.log %55 : vector<8x1xf32>
    %57 = arith.addf %50, %56 : vector<8x1xf32>
    %58 = vector.extract_strided_slice %29 {offsets = [0, 0], sizes = [8, 1], strides = [1, 1]} : vector<8x4xf32> to vector<8x1xf32>
    %59 = vector.broadcast %57 : vector<8x1xf32> to vector<8x8xf32>
    %60 = arith.subf %48, %59 : vector<8x8xf32>
    %61 = vector.broadcast %58 : vector<8x1xf32> to vector<8x8xf32>
    %62 = arith.mulf %61, %60 : vector<8x8xf32>
    %63 = arith.addf %47, %62 : vector<8x8xf32>
    %64 = vector.extract_strided_slice %46 {offsets = [0, 8], sizes = [8, 8], strides = [1, 1]} : vector<8x32xf32> to vector<8x8xf32>
    %cst_37 = arith.constant dense<0xFF800000> : vector<8xf32>
    %65 = vector.multi_reduction <maximumf>, %64, %cst_37 [1] : vector<8x8xf32> to vector<8xf32>
    %66 = vector.shape_cast %65 : vector<8xf32> to vector<8x1xf32>
    %67 = vector.broadcast %66 : vector<8x1xf32> to vector<8x8xf32>
    %68 = arith.subf %64, %67 : vector<8x8xf32>
    %69 = math.exp %68 : vector<8x8xf32>
    %cst_38 = arith.constant dense<0.000000e+00> : vector<8xf32>
    %70 = vector.multi_reduction <add>, %69, %cst_38 [1] : vector<8x8xf32> to vector<8xf32>
    %71 = vector.shape_cast %70 : vector<8xf32> to vector<8x1xf32>
    %72 = math.log %71 : vector<8x1xf32>
    %73 = arith.addf %66, %72 : vector<8x1xf32>
    %74 = vector.extract_strided_slice %29 {offsets = [0, 1], sizes = [8, 1], strides = [1, 1]} : vector<8x4xf32> to vector<8x1xf32>
    %75 = vector.broadcast %73 : vector<8x1xf32> to vector<8x8xf32>
    %76 = arith.subf %64, %75 : vector<8x8xf32>
    %77 = vector.broadcast %74 : vector<8x1xf32> to vector<8x8xf32>
    %78 = arith.mulf %77, %76 : vector<8x8xf32>
    %79 = arith.addf %63, %78 : vector<8x8xf32>
    %80 = vector.extract_strided_slice %46 {offsets = [0, 16], sizes = [8, 8], strides = [1, 1]} : vector<8x32xf32> to vector<8x8xf32>
    %cst_39 = arith.constant dense<0xFF800000> : vector<8xf32>
    %81 = vector.multi_reduction <maximumf>, %80, %cst_39 [1] : vector<8x8xf32> to vector<8xf32>
    %82 = vector.shape_cast %81 : vector<8xf32> to vector<8x1xf32>
    %83 = vector.broadcast %82 : vector<8x1xf32> to vector<8x8xf32>
    %84 = arith.subf %80, %83 : vector<8x8xf32>
    %85 = math.exp %84 : vector<8x8xf32>
    %cst_40 = arith.constant dense<0.000000e+00> : vector<8xf32>
    %86 = vector.multi_reduction <add>, %85, %cst_40 [1] : vector<8x8xf32> to vector<8xf32>
    %87 = vector.shape_cast %86 : vector<8xf32> to vector<8x1xf32>
    %88 = math.log %87 : vector<8x1xf32>
    %89 = arith.addf %82, %88 : vector<8x1xf32>
    %90 = vector.extract_strided_slice %29 {offsets = [0, 2], sizes = [8, 1], strides = [1, 1]} : vector<8x4xf32> to vector<8x1xf32>
    %91 = vector.broadcast %89 : vector<8x1xf32> to vector<8x8xf32>
    %92 = arith.subf %80, %91 : vector<8x8xf32>
    %93 = vector.broadcast %90 : vector<8x1xf32> to vector<8x8xf32>
    %94 = arith.mulf %93, %92 : vector<8x8xf32>
    %95 = arith.addf %79, %94 : vector<8x8xf32>
    %96 = vector.extract_strided_slice %46 {offsets = [0, 24], sizes = [8, 8], strides = [1, 1]} : vector<8x32xf32> to vector<8x8xf32>
    %cst_41 = arith.constant dense<0xFF800000> : vector<8xf32>
    %97 = vector.multi_reduction <maximumf>, %96, %cst_41 [1] : vector<8x8xf32> to vector<8xf32>
    %98 = vector.shape_cast %97 : vector<8xf32> to vector<8x1xf32>
    %99 = vector.broadcast %98 : vector<8x1xf32> to vector<8x8xf32>
    %100 = arith.subf %96, %99 : vector<8x8xf32>
    %101 = math.exp %100 : vector<8x8xf32>
    %cst_42 = arith.constant dense<0.000000e+00> : vector<8xf32>
    %102 = vector.multi_reduction <add>, %101, %cst_42 [1] : vector<8x8xf32> to vector<8xf32>
    %103 = vector.shape_cast %102 : vector<8xf32> to vector<8x1xf32>
    %104 = math.log %103 : vector<8x1xf32>
    %105 = arith.addf %98, %104 : vector<8x1xf32>
    %106 = vector.extract_strided_slice %29 {offsets = [0, 3], sizes = [8, 1], strides = [1, 1]} : vector<8x4xf32> to vector<8x1xf32>
    %107 = vector.broadcast %105 : vector<8x1xf32> to vector<8x8xf32>
    %108 = arith.subf %96, %107 : vector<8x8xf32>
    %109 = vector.broadcast %106 : vector<8x1xf32> to vector<8x8xf32>
    %110 = arith.mulf %109, %108 : vector<8x8xf32>
    %111 = arith.addf %95, %110 : vector<8x8xf32>
    %c0_43 = arith.constant 0 : index
    %c0_44 = arith.constant 0 : index
    %112 = vector.load %arg13[%c0_43, %c0_44] : memref<8x8xf32, #tpu.memory_space<vmem>>, vector<8x8xf32>
    tpu.vector_store %arg13[%c0_43, %c0_44], %111 {strides = array<i32>} : memref<8x8xf32, #tpu.memory_space<vmem>>, vector<8x8xf32>,
    return
  }
  func.func @transform_0(%arg0: i32) -> (i32, i32) {
    %c0_i32 = arith.constant 0 : i32
    %c0_i32_0 = arith.constant 0 : i32
    return %arg0, %c0_i32 : i32, i32
  }
  func.func @transform_1(%arg0: i32) -> (i32, i32) {
    %c0_i32 = arith.constant 0 : i32
    %c0_i32_0 = arith.constant 0 : i32
    return %arg0, %c0_i32 : i32, i32
  }
  func.func @transform_2(%arg0: i32) -> (i32, i32) {
    %c0_i32 = arith.constant 0 : i32
    %c0_i32_0 = arith.constant 0 : i32
    %c0_i32_1 = arith.constant 0 : i32
    return %c0_i32, %c0_i32_0 : i32, i32
  }
  func.func @transform_3(%arg0: i32) -> (i32, i32) {
    %c0_i32 = arith.constant 0 : i32
    %c0_i32_0 = arith.constant 0 : i32
    %c0_i32_1 = arith.constant 0 : i32
    return %c0_i32, %c0_i32_0 : i32, i32
  }
  func.func @transform_4(%arg0: i32) -> (i32, i32) {
    %c0_i32 = arith.constant 0 : i32
    %c0_i32_0 = arith.constant 0 : i32
    %c0_i32_1 = arith.constant 0 : i32
    return %c0_i32, %c0_i32_0 : i32, i32
  }
  func.func @transform_5(%arg0: i32) -> (i32, i32) {
    %c0_i32 = arith.constant 0 : i32
    %c0_i32_0 = arith.constant 0 : i32
    %c0_i32_1 = arith.constant 0 : i32
    return %c0_i32, %c0_i32_0 : i32, i32
  }
  func.func @transform_6(%arg0: i32) -> (i32, i32) {
    %c0_i32 = arith.constant 0 : i32
    %c0_i32_0 = arith.constant 0 : i32
    %c0_i32_1 = arith.constant 0 : i32
    return %c0_i32, %c0_i32_0 : i32, i32
  }
  func.func @transform_7(%arg0: i32) -> (i32, i32) {
    %c0_i32 = arith.constant 0 : i32
    %c0_i32_0 = arith.constant 0 : i32
    %c0_i32_1 = arith.constant 0 : i32
    return %c0_i32, %c0_i32_0 : i32, i32
  }
  func.func @transform_8(%arg0: i32) -> (i32, i32) {
    %c0_i32 = arith.constant 0 : i32
    %c0_i32_0 = arith.constant 0 : i32
    %c0_i32_1 = arith.constant 0 : i32
    return %c0_i32, %c0_i32_0 : i32, i32
  }
  func.func @transform_9(%arg0: i32) -> (i32, i32) {
    %c0_i32 = arith.constant 0 : i32
    %c0_i32_0 = arith.constant 0 : i32
    %c0_i32_1 = arith.constant 0 : i32
    return %c0_i32, %c0_i32_0 : i32, i32
  }
  func.func @transform_10(%arg0: i32) -> (i32, i32) {
    %c0_i32 = arith.constant 0 : i32
    %c0_i32_0 = arith.constant 0 : i32
    %c0_i32_1 = arith.constant 0 : i32
    return %c0_i32, %c0_i32_0 : i32, i32
  }
  func.func @transform_11(%arg0: i32) -> (i32, i32) {
    %c0_i32 = arith.constant 0 : i32
    %c0_i32_0 = arith.constant 0 : i32
    %c0_i32_1 = arith.constant 0 : i32
    return %c0_i32, %c0_i32_0 : i32, i32
  }
  func.func @transform_12(%arg0: i32) -> (i32, i32) {
    %c0_i32 = arith.constant 0 : i32
    %c0_i32_0 = arith.constant 0 : i32
    return %arg0, %c0_i32 : i32, i32
  }
  func.func @transform_13(%arg0: i32) -> (i32, i32) {
    %c0_i32 = arith.constant 0 : i32
    %c0_i32_0 = arith.constant 0 : i32
    return %arg0, %c0_i32 : i32, i32
  }
}

</mosaic_0001>

<llo_original>
// kernel: tpu_custom_call.1
$region0: #{tpu_custom_call.1}
  #allocation0 [shape = 'u32[]', space=smem, size = 0x4, offset = 0x4, fixed_abs, tag = 'smem constant byte address 0x4 - core index']
  #allocation1 [shape = 'u32[72,128]{1,0:T(1,128)}', space=vmem, size = 0x9000, scoped, tag = 'internal scratch']
  %s0 = inlined_call_operand.vmem [shape: f32[8,16], index: 0, kind: input, shape index: {}]
  %s1 = inlined_call_operand.vmem [shape: f32[8,16], index: 1, kind: input, shape index: {}]
  %s2 = inlined_call_operand.vmem [shape: bf16[16,16], index: 2, kind: input, shape index: {}]
  %s3 = inlined_call_operand.vmem [shape: bf16[16,16], index: 3, kind: input, shape index: {}]
  %s4 = inlined_call_operand.vmem [shape: f32[1,16], index: 4, kind: input, shape index: {}]
  %s5 = inlined_call_operand.vmem [shape: bf16[16,4], index: 5, kind: input, shape index: {}]
  %s6 = inlined_call_operand.vmem [shape: f32[1,4], index: 6, kind: input, shape index: {}]
  %s7 = inlined_call_operand.vmem [shape: bf16[16,64], index: 7, kind: input, shape index: {}]
  %s8 = inlined_call_operand.vmem [shape: bf16[16,64], index: 8, kind: input, shape index: {}]
  %s9 = inlined_call_operand.vmem [shape: f32[1,64], index: 9, kind: input, shape index: {}]
  %s10 = inlined_call_operand.vmem [shape: bf16[64,32], index: 10, kind: input, shape index: {}]
  %s11 = inlined_call_operand.vmem [shape: f32[1,32], index: 11, kind: input, shape index: {}]
  %s12 = inlined_call_operand.hbm [shape: f32[8,8], index: 12, kind: output, shape index: {0}]
  %s13 = inlined_call_operand.vmem [shape: f32[8,4], index: 13, kind: output, shape index: {1}]
  %14 = xla_tuple %s12, %s13
  %s15 = sld [smem:[#allocation0]]
  $region66: #{tpu_custom_call.1} parent=0
    _
  %s17 = ssub.s32 1, %s15
  %s18 = scalar_select 0, %s17, %s15
  $region1: #{tpu_custom_call.1} parent=0
    #allocation2 [shape = 'u8[4096]{0}', space=vmem, size = 0x1000, scoped, tag = 'output window, operand 0, single buffered']
    #allocation3 [shape = 's32[1]{0}', space=sflag, size = 0x4, scoped, tag = 'scoped memory for tpu_custom_call.1']
    %19 = vsyncpa [#allocation3], 0
    // Predicated region
    $region2: #{tpu_custom_call.1} parent=1 // pred_check
      _
    $region3: #{tpu_custom_call.1} parent=1 // pred_check_branch
      %21 = sbr.rel (0) target = $region5
    $region4: #{tpu_custom_call.1} parent=1 // pred_region
      _
    $region5: #{tpu_custom_call.1} parent=1 // pred_fallthru
      _
    // Predicated region
    $region6: #{tpu_custom_call.1} parent=1 // pred_check
      _
    $region7: #{tpu_custom_call.1} parent=1 // pred_check_branch
      %23 = sbr.rel (0) target = $region9
    $region8: #{tpu_custom_call.1} parent=1 // pred_region
      _
    $region9: #{tpu_custom_call.1} parent=1 // pred_fallthru
      _
    // Predicated region
    $region10: #{tpu_custom_call.1} parent=1 // pred_check
      _
    $region11: #{tpu_custom_call.1} parent=1 // pred_check_branch
      %25 = sbr.rel (0) target = $region13
    $region12: #{tpu_custom_call.1} parent=1 // pred_region
      _
    $region13: #{tpu_custom_call.1} parent=1 // pred_fallthru
      _
    // Predicated region
    $region14: #{tpu_custom_call.1} parent=1 // pred_check
      _
    $region15: #{tpu_custom_call.1} parent=1 // pred_check_branch
      %27 = sbr.rel (0) target = $region17
    $region16: #{tpu_custom_call.1} parent=1 // pred_region
      _
    $region17: #{tpu_custom_call.1} parent=1 // pred_fallthru
      _
    // Predicated region
    $region18: #{tpu_custom_call.1} parent=1 // pred_check
      _
    $region19: #{tpu_custom_call.1} parent=1 // pred_check_branch
      %29 = sbr.rel (0) target = $region21
    $region20: #{tpu_custom_call.1} parent=1 // pred_region
      _
    $region21: #{tpu_custom_call.1} parent=1 // pred_fallthru
      _
    // Predicated region
    $region22: #{tpu_custom_call.1} parent=1 // pred_check
      _
    $region23: #{tpu_custom_call.1} parent=1 // pred_check_branch
      %31 = sbr.rel (0) target = $region25
    $region24: #{tpu_custom_call.1} parent=1 // pred_region
      _
    $region25: #{tpu_custom_call.1} parent=1 // pred_fallthru
      _
    // Predicated region
    $region26: #{tpu_custom_call.1} parent=1 // pred_check
      _
    $region27: #{tpu_custom_call.1} parent=1 // pred_check_branch
      %33 = sbr.rel (0) target = $region29
    $region28: #{tpu_custom_call.1} parent=1 // pred_region
      _
    $region29: #{tpu_custom_call.1} parent=1 // pred_fallthru
      _
    // Predicated region
    $region30: #{tpu_custom_call.1} parent=1 // pred_check
      _
    $region31: #{tpu_custom_call.1} parent=1 // pred_check_branch
      %35 = sbr.rel (0) target = $region33
    $region32: #{tpu_custom_call.1} parent=1 // pred_region
      _
    $region33: #{tpu_custom_call.1} parent=1 // pred_fallthru
      _
    // Predicated region
    $region34: #{tpu_custom_call.1} parent=1 // pred_check
      _
    $region35: #{tpu_custom_call.1} parent=1 // pred_check_branch
      %37 = sbr.rel (0) target = $region37
    $region36: #{tpu_custom_call.1} parent=1 // pred_region
      _
    $region37: #{tpu_custom_call.1} parent=1 // pred_fallthru
      _
    // Predicated region
    $region38: #{tpu_custom_call.1} parent=1 // pred_check
      _
    $region39: #{tpu_custom_call.1} parent=1 // pred_check_branch
      %39 = sbr.rel (0) target = $region41
    $region40: #{tpu_custom_call.1} parent=1 // pred_region
      _
    $region41: #{tpu_custom_call.1} parent=1 // pred_fallthru
      _
    // Predicated region
    $region42: #{tpu_custom_call.1} parent=1 // pred_check
      _
    $region43: #{tpu_custom_call.1} parent=1 // pred_check_branch
      %41 = sbr.rel (0) target = $region45
    $region44: #{tpu_custom_call.1} parent=1 // pred_region
      _
    $region45: #{tpu_custom_call.1} parent=1 // pred_fallthru
      _
    // Predicated region
    $region46: #{tpu_custom_call.1} parent=1 // pred_check
      _
    $region47: #{tpu_custom_call.1} parent=1 // pred_check_branch
      %43 = sbr.rel (0) target = $region49
    $region48: #{tpu_custom_call.1} parent=1 // pred_region
      _
    $region49: #{tpu_custom_call.1} parent=1 // pred_fallthru
      _
    %v45 = vld [vmem:[%s0] sm:$0xff]
    %v46 = vpack.c.bf16 %v45, %v45
    %v47 = vld [vmem:[%s1] sm:$0xff]
    %v48 = vpack.c.bf16 %v47, %v47
    %v49 = vld [vmem:[%s2] sm:$0xf]
    %v50 = vld [vmem:[%s2 + $0x4] sm:$0xf]
    %v51 = vld [vmem:[%s3] sm:$0xf]
    %v52 = vld [vmem:[%s3 + $0x4] sm:$0xf]
    %v55 = vunpack.c.l.b16 %v51
    %v56 = vunpack.c.l.b16 %v52
    %v57 = vpack.c.b16 %v56, %v55
    %vm59 = vcmask 130048
    %v61 = vsel %vm59, %v48, 0
    %63 = vmatpush.bf16.msra.mxu0 0
    %64 = vmatpush.bf16.msra.mxu0 0
    %65 = vmatpush.bf16.msra.mxu0 0
    %66 = vmatpush.bf16.msra.mxu0 0
    %67 = vmatpush.bf16.msra.mxu0 0
    %68 = vmatpush.bf16.msra.mxu0 0
    %69 = vmatpush.bf16.msra.mxu0 0
    %70 = vmatpush.bf16.msra.mxu0 %v57
    %71 = vmatmul.bf16.gmra.mxu0 %v61
    %v72 = vpop.f32.mrf.mxu0
    %v73 = vadd.f32 0.0, %v72
    %v74 = vpop.f32.mrf.mxu0
    %75 = vdwg.mxu0
    %v78 = vunpack.c.l.b16 %v49
    %v79 = vunpack.c.l.b16 %v50
    %v80 = vpack.c.b16 %v79, %v78
    %v83 = vsel %vm59, %v46, 0
    %85 = vmatpush.bf16.msra.mxu0 0
    %86 = vmatpush.bf16.msra.mxu0 0
    %87 = vmatpush.bf16.msra.mxu0 0
    %88 = vmatpush.bf16.msra.mxu0 0
    %89 = vmatpush.bf16.msra.mxu0 0
    %90 = vmatpush.bf16.msra.mxu0 0
    %91 = vmatpush.bf16.msra.mxu0 0
    %92 = vmatpush.bf16.msra.mxu0 %v80
    %93 = vmatmul.bf16.gmra.mxu0 %v83
    %v94 = vpop.f32.mrf.mxu0
    %v95 = vadd.f32 %v73, %v94
    %v96 = vpop.f32.mrf.mxu0
    %97 = vdwg.mxu0
    %v98 = vld [vmem:[%s4] sm:$0x1]
    %v100 = vperm.slane %v98, 0
    %v102 = vadd.f32 %v95, %v100
    %v103 = vmax.f32 %v102, 0.0
    %v104 = vpack.c.bf16 %v103, %v103
    %v105 = vld [vmem:[%s5] sm:$0xf]
    %v106 = vld [vmem:[%s5 + $0x4] sm:$0xf]
    %v107 = vld [vmem:[%s6] sm:$0x1]
    %v109 = vperm.slane %v107, 0
    %v113 = vunpack.c.l.b16 %v105
    %v114 = vunpack.c.l.b16 %v106
    %v115 = vpack.c.b16 %v114, %v113
    %v118 = vsel %vm59, %v104, 0
    %120 = vmatpush.bf16.msra.mxu0 0
    %121 = vmatpush.bf16.msra.mxu0 0
    %122 = vmatpush.bf16.msra.mxu0 0
    %123 = vmatpush.bf16.msra.mxu0 0
    %124 = vmatpush.bf16.msra.mxu0 0
    %125 = vmatpush.bf16.msra.mxu0 0
    %126 = vmatpush.bf16.msra.mxu0 0
    %127 = vmatpush.bf16.msra.mxu0 %v115
    %128 = vmatmul.bf16.gmra.mxu0 %v118
    %v129 = vpop.f32.mrf.mxu0
    %v130 = vadd.f32 %v109, %v129
    %v131 = vpop.f32.mrf.mxu0
    %132 = vdwg.mxu0
    %vm133 = vcmask 31744
    %v134 = vsel %vm133, %v130, -inf
    %135 = vmax.xlane.f32.xlu0 %v134
    %v136 = vpop.xlane.xlu0 %135
    %v137 = vsub.f32 %v130, %v136
    %v138 = vmul.f32 %v137, 1.442695
    %v139 = vpow.pop %v138
    %v140 = vsel %vm133, %v139, 0.0
    %141 = vadd.xlane.f32.xlu0 %v140
    %v142 = vpop.xlane.xlu0 %141
    %v143 = vrcp.pop %v142
    %v144 = vmul.f32 %v139, %v143
    %145 = vst.msk [vmem:[%s13] sm:$0xff] %vm133, %v144
    %v146 = vld [vmem:[%s7] sm:$0xf]
    %v147 = vld [vmem:[%s7 + $0x4] sm:$0xf]
    %v148 = vld [vmem:[%s8] sm:$0xf]
    %v149 = vld [vmem:[%s8 + $0x4] sm:$0xf]
    %v152 = vunpack.c.l.b16 %v148
    %v153 = vunpack.c.l.b16 %v149
    %v154 = vpack.c.b16 %v153, %v152
    %156 = vmatpush.bf16.msra.mxu0 0
    %157 = vmatpush.bf16.msra.mxu0 0
    %158 = vmatpush.bf16.msra.mxu0 0
    %159 = vmatpush.bf16.msra.mxu0 0
    %160 = vmatpush.bf16.msra.mxu0 0
    %161 = vmatpush.bf16.msra.mxu0 0
    %162 = vmatpush.bf16.msra.mxu0 0
    %163 = vmatpush.bf16.msra.mxu0 %v154
    %164 = vmatmul.bf16.gmra.mxu0 %v61
    %v165 = vpop.f32.mrf.mxu0
    %v166 = vadd.f32 0.0, %v165
    %v167 = vpop.f32.mrf.mxu0
    %168 = vdwg.mxu0
    %v171 = vunpack.c.l.b16 %v146
    %v172 = vunpack.c.l.b16 %v147
    %v173 = vpack.c.b16 %v172, %v171
    %175 = vmatpush.bf16.msra.mxu0 0
    %176 = vmatpush.bf16.msra.mxu0 0
    %177 = vmatpush.bf16.msra.mxu0 0
    %178 = vmatpush.bf16.msra.mxu0 0
    %179 = vmatpush.bf16.msra.mxu0 0
    %180 = vmatpush.bf16.msra.mxu0 0
    %181 = vmatpush.bf16.msra.mxu0 0
    %182 = vmatpush.bf16.msra.mxu0 %v173
    %183 = vmatmul.bf16.gmra.mxu0 %v83
    %v184 = vpop.f32.mrf.mxu0
    %v185 = vadd.f32 %v166, %v184
    %v186 = vpop.f32.mrf.mxu0
    %187 = vdwg.mxu0
    %v188 = vld [vmem:[%s9] sm:$0x1]
    %v190 = vperm.slane %v188, 0
    %v192 = vadd.f32 %v185, %v190
    %v193 = vmax.f32 %v192, 0.0
    %v194 = vpack.c.bf16 %v193, %v193
    %v195 = vld [vmem:[%s10] sm:$0xf]
    %v196 = vld [vmem:[%s10 + $0x4] sm:$0xf]
    %v197 = vld [vmem:[%s10 + $0x8] sm:$0xf]
    %v198 = vld [vmem:[%s10 + $0xc] sm:$0xf]
    %v199 = vld [vmem:[%s10 + $0x10] sm:$0xf]
    %v200 = vld [vmem:[%s10 + $0x14] sm:$0xf]
    %v201 = vld [vmem:[%s10 + $0x18] sm:$0xf]
    %v202 = vld [vmem:[%s10 + $0x1c] sm:$0xf]
    %v203 = vld [vmem:[%s11] sm:$0x1]
    %v205 = vperm.slane %v203, 0
    %v215 = vunpack.c.l.b16 %v195
    %v216 = vunpack.c.l.b16 %v196
    %v217 = vunpack.c.l.b16 %v197
    %v218 = vunpack.c.l.b16 %v198
    %v219 = vunpack.c.l.b16 %v199
    %v220 = vunpack.c.l.b16 %v200
    %v221 = vunpack.c.l.b16 %v201
    %v222 = vunpack.c.l.b16 %v202
    %v223 = vpack.c.b16 %v216, %v215
    %v224 = vpack.c.b16 %v218, %v217
    %v225 = vpack.c.b16 %v220, %v219
    %v226 = vpack.c.b16 %v222, %v221
    %vm231 = vcmask 523264
    %v233 = vsel %vm231, %v194, 0
    %235 = vmatpush.bf16.msra.mxu0 0
    %236 = vmatpush.bf16.msra.mxu0 0
    %237 = vmatpush.bf16.msra.mxu0 0
    %238 = vmatpush.bf16.msra.mxu0 0
    %239 = vmatpush.bf16.msra.mxu0 %v226
    %240 = vmatpush.bf16.msra.mxu0 %v225
    %241 = vmatpush.bf16.msra.mxu0 %v224
    %242 = vmatpush.bf16.msra.mxu0 %v223
    %243 = vmatmul.bf16.gmra.mxu0 %v233
    %v244 = vpop.f32.mrf.mxu0
    %v245 = vadd.f32 %v205, %v244
    %v246 = vpop.f32.mrf.mxu0
    %247 = vdwg.mxu0
    %vm248 = vcmask 64512
    %v249 = vsel %vm248, %v245, -inf
    %250 = vmax.xlane.f32.xlu0 %v249
    %v251 = vpop.xlane.xlu0 %250
    %v252 = vsub.f32 %v245, %v251
    %v253 = vmul.f32 %v252, 1.442695
    %v254 = vpow.pop %v253
    %v255 = vsel %vm248, %v254, 0.0
    %256 = vadd.xlane.f32.xlu0 %v255
    %v257 = vpop.xlane.xlu0 %256
    %v258 = vlog2.pop %v257
    %v259 = vmul.f32 %v258, 0.6931472
    %v260 = vadd.f32 %v251, %v259
    %v261 = vsub.f32 %v245, %v260
    %263 = vset.pattern.permute.xlu0 0
    %264 = vperm.xlu0 %263, %v144
    %v265 = vpop.permute.xlu0 %264
    %v267 = vmul.f32 %v265, %v261
    %v268 = vadd.f32 %v267, 0.0
    %vm269 = vcmask 130112
    %v270 = vsel %vm269, %v245, -inf
    %271 = vmax.xlane.f32.xlu0 %v270
    %v272 = vpop.xlane.xlu0 %271
    %v273 = vsub.f32 %v245, %v272
    %v274 = vmul.f32 %v273, 1.442695
    %v275 = vpow.pop %v274
    %277 = vrot.lane.b32.xlu0 %v275, 120
    %v278 = vpop.permute.xlu0 %277
    %v280 = vsel %vm248, %v278, 0.0
    %281 = vadd.xlane.f32.xlu0 %v280
    %v282 = vpop.xlane.xlu0 %281
    %v283 = vlog2.pop %v282
    %v284 = vmul.f32 %v283, 0.6931472
    %v285 = vadd.f32 %v272, %v284
    %v286 = vsub.f32 %v245, %v285
    %287 = vset.pattern.permute.xlu0 1
    %288 = vperm.xlu0 %287, %v144
    %v289 = vpop.permute.xlu0 %288
    %v291 = vmul.f32 %v289, %v286
    %293 = vrot.lane.b32.xlu0 %v291, 120
    %v294 = vpop.permute.xlu0 %293
    %v296 = vadd.f32 %v268, %v294
    %vm297 = vcmask 195712
    %v298 = vsel %vm297, %v245, -inf
    %299 = vmax.xlane.f32.xlu0 %v298
    %v300 = vpop.xlane.xlu0 %299
    %v301 = vsub.f32 %v245, %v300
    %v302 = vmul.f32 %v301, 1.442695
    %v303 = vpow.pop %v302
    %305 = vrot.lane.b32.xlu0 %v303, 112
    %v306 = vpop.permute.xlu0 %305
    %v308 = vsel %vm248, %v306, 0.0
    %309 = vadd.xlane.f32.xlu0 %v308
    %v310 = vpop.xlane.xlu0 %309
    %v311 = vlog2.pop %v310
    %v312 = vmul.f32 %v311, 0.6931472
    %v313 = vadd.f32 %v300, %v312
    %v314 = vsub.f32 %v245, %v313
    %315 = vset.pattern.permute.xlu0 2
    %316 = vperm.xlu0 %315, %v144
    %v317 = vpop.permute.xlu0 %316
    %v319 = vmul.f32 %v317, %v314
    %321 = vrot.lane.b32.xlu0 %v319, 112
    %v322 = vpop.permute.xlu0 %321
    %v324 = vadd.f32 %v296, %v322
    %vm325 = vcmask 261312
    %v326 = vsel %vm325, %v245, -inf
    %327 = vmax.xlane.f32.xlu0 %v326
    %v328 = vpop.xlane.xlu0 %327
    %v329 = vsub.f32 %v245, %v328
    %v330 = vmul.f32 %v329, 1.442695
    %v331 = vpow.pop %v330
    %333 = vrot.lane.b32.xlu0 %v331, 104
    %v334 = vpop.permute.xlu0 %333
    %v336 = vsel %vm248, %v334, 0.0
    %337 = vadd.xlane.f32.xlu0 %v336
    %v338 = vpop.xlane.xlu0 %337
    %v339 = vlog2.pop %v338
    %v340 = vmul.f32 %v339, 0.6931472
    %v341 = vadd.f32 %v328, %v340
    %v342 = vsub.f32 %v245, %v341
    %343 = vset.pattern.permute.xlu0 3
    %344 = vperm.xlu0 %343, %v144
    %v345 = vpop.permute.xlu0 %344
    %v347 = vmul.f32 %v345, %v342
    %349 = vrot.lane.b32.xlu0 %v347, 104
    %v350 = vpop.permute.xlu0 %349
    %v352 = vadd.f32 %v324, %v350
    %353 = vst.msk [vmem:[#allocation2] sm:$0xff] %vm248, %v352
    // Predicated region
    $region50: #{tpu_custom_call.1} parent=1 // pred_check
      _
    $region51: #{tpu_custom_call.1} parent=1 // pred_check_branch
      %355 = sbr.rel (0) target = $region53
    $region52: #{tpu_custom_call.1} parent=1 // pred_region
      %357 = vsyncadd [#allocation3], 0
      %s359 = sshll.u32 [#allocation2], 4
      %s360 = int_to_ptr.vmem [resolvable:$true] %s359
      %s361 = sshll.u32 %s12, 4
      %s362 = int_to_ptr.hbm [resolvable:$true] %s361
      %364 = dma.vmem_to_hbm [thread:$0]  %s360, 128, %s362, [#allocation3]
    $region53: #{tpu_custom_call.1} parent=1 // pred_fallthru
      _
    // Predicated region
    $region54: #{tpu_custom_call.1} parent=1 // pred_check
      _
    $region55: #{tpu_custom_call.1} parent=1 // pred_check_branch
      %366 = sbr.rel (0) target = $region57
    $region56: #{tpu_custom_call.1} parent=1 // pred_region
      _
    $region57: #{tpu_custom_call.1} parent=1 // pred_fallthru
      _
    // Predicated region
    $region58: #{tpu_custom_call.1} parent=1 // pred_check
      _
    $region59: #{tpu_custom_call.1} parent=1 // pred_check_branch
      %368 = sbr.rel (0) target = $region61
    $region60: #{tpu_custom_call.1} parent=1 // pred_region
      %370 = dma.done [#allocation3], 128
    $region61: #{tpu_custom_call.1} parent=1 // pred_fallthru
      _
    // Predicated region
    $region62: #{tpu_custom_call.1} parent=1 // pred_check
      _
    $region63: #{tpu_custom_call.1} parent=1 // pred_check_branch
      %372 = sbr.rel (0) target = $region65
    $region64: #{tpu_custom_call.1} parent=1 // pred_region
      _
    $region65: #{tpu_custom_call.1} parent=1 // pred_fallthru
      _
    %373 = vsyncpa [#allocation3], 1

</llo_original>
